<compile_context>
chip_gen: v7x
topology: tpu7x:2x2x1
jax: 0.10.0
libtpu: 0.0.40
codegen_flags: <defaults>
</compile_context>

<pallas_src>
import jax
import jax.numpy as jnp
from jax import lax
from jax.experimental import pallas as pl
from jax.experimental.pallas import tpu as pltpu


def _round_up(a: int, b: int) -> int:
    return (a + b - 1) // b * b


def _make_edge_mask_kernel(thres: float, use_col_mask: bool):
    # NB: `thres` stays a Python float so it lowers to an immediate rather
    # than a captured array constant (the previous compile failure).
    def kernel(mid_ref, top_ref, bot_ref, o_ref):
        h = pl.program_id(1)
        is_first = h == 0
        is_last = h == pl.num_programs(1) - 1

        x = mid_ref[...]                       # (TB, C, TH, Wp), input dtype
        cmin = jnp.min(x, axis=1)              # (TB, TH, Wp)
        cmax = jnp.max(x, axis=1)
        tb, th, wp = cmin.shape

        # Halo rows: last row of the 8-row block above, first row of the
        # 8-row block below.  Replaced by zeros (= unfold zero padding) on
        # the first / last H tile.
        top = top_ref[:, :, 7:8, :]            # (TB, C, 1, Wp)
        bot = bot_ref[:, :, 0:1, :]
        tmin = jnp.min(top, axis=1)            # (TB, 1, Wp)
        tmax = jnp.max(top, axis=1)
        bmin = jnp.min(bot, axis=1)
        bmax = jnp.max(bot, axis=1)
        tmin = jnp.where(is_first, jnp.zeros_like(tmin), tmin)
        tmax = jnp.where(is_first, jnp.zeros_like(tmax), tmax)
        bmin = jnp.where(is_last, jnp.zeros_like(bmin), bmin)
        bmax = jnp.where(is_last, jnp.zeros_like(bmax), bmax)

        # Vertical pass: sublane rolls (XLU) + halo injection at tile edges.
        row = lax.broadcasted_iota(jnp.int32, (tb, th, wp), 1)
        first_row = row == 0
        last_row = row == th - 1
        up_min = jnp.where(first_row, tmin, pltpu.roll(cmin, shift=1, axis=1))
        up_max = jnp.where(first_row, tmax, pltpu.roll(cmax, shift=1, axis=1))
        dn_min = jnp.where(last_row, bmin, pltpu.roll(cmin, shift=th - 1, axis=1))
        dn_max = jnp.where(last_row, bmax, pltpu.roll(cmax, shift=th - 1, axis=1))
        rmin = jnp.minimum(jnp.minimum(cmin, up_min), dn_min)
        rmax = jnp.maximum(jnp.maximum(cmax, up_max), dn_max)

        # Horizontal pass: lane rolls.  If W was padded (Wp > W) the zero
        # columns already reproduce unfold's zero padding (including the
        # wrap-around column), so no masks are needed; if Wp == W the image
        # edges need explicit masking.
        lmin = pltpu.roll(rmin, shift=1, axis=2)
        lmax = pltpu.roll(rmax, shift=1, axis=2)
        rtmin = pltpu.roll(rmin, shift=wp - 1, axis=2)
        rtmax = pltpu.roll(rmax, shift=wp - 1, axis=2)
        if use_col_mask:
            col = lax.broadcasted_iota(jnp.int32, (tb, th, wp), 2)
            zero = jnp.zeros_like(rmin)
            lmin = jnp.where(col >= 1, lmin, zero)
            lmax = jnp.where(col >= 1, lmax, zero)
            rtmin = jnp.where(col < wp - 1, rtmin, zero)
            rtmax = jnp.where(col < wp - 1, rtmax, zero)
        wmin = jnp.minimum(jnp.minimum(rmin, lmin), rtmin)
        wmax = jnp.maximum(jnp.maximum(rmax, lmax), rtmax)

        # Final subtract / compare in f32 for bit parity with the reference.
        diff = wmax.astype(jnp.float32) - wmin.astype(jnp.float32)
        o_ref[:, 0] = (diff > thres).astype(o_ref.dtype)

    return kernel


def extract_depth_edge_mask(batch_depth: jax.Array, thres: float,
                            tile_rows=None) -> jax.Array:
    """Pallas equivalent of ExtractDepthEdgeMask(thres).forward(batch_depth)."""
    B, C, H, W = batch_depth.shape
    itemsize = jnp.dtype(batch_depth.dtype).itemsize

    # Lane-dense width: pad to a multiple of 128 with zeros when needed.
    Wp = W if (W % 128 == 0 and W > 0) else _round_up(max(W, 1), 128)

    # H tile: ~2 MiB input slab per step, multiple of 8 sublanes.
    if tile_rows is not None:
        TH = max(8, (int(tile_rows) // 8) * 8)
    else:
        row_bytes = max(1, C * Wp * itemsize)
        TH = ((2 << 20) // row_bytes) // 8 * 8
        TH = max(8, min(TH, _round_up(H, 8)))
    Hp = H if H % TH == 0 else _round_up(H, TH)
    n_h = Hp // TH

    # Batch blocking: amortize per-grid-step overhead (~0.35 us) on small
    # planes by packing several batch items per step (divisor of B).
    if n_h == 1:
        per_item = max(1, C * Hp * Wp * itemsize)
        cap = max(1, (2 << 20) // per_item)
        TB = 1
        for d in range(1, B + 1):
            if B % d == 0 and d <= cap:
                TB = d
    else:
        TB = 1
    nb = B // TB

    x = batch_depth
    if Hp != H or Wp != W:
        # Zero padding == F.unfold's padding, so this is semantics-preserving.
        x = jnp.pad(x, ((0, 0), (0, 0), (0, Hp - H), (0, Wp - W)))
    use_col_mask = (Wp == W)

    # Generation-aware scoped-VMEM limit: double-buffered blocks + temps,
    # clamped below the physical per-core capacity (64 MiB on v7x).
    mid_bytes = TB * C * TH * Wp * itemsize
    halo_bytes = TB * C * 8 * Wp * itemsize
    out_bytes = TB * TH * Wp * 4
    temp_bytes = TB * TH * Wp * (10 * itemsize + 2 * 4)
    vmem_needed = 2 * (mid_bytes + 2 * halo_bytes) + 2 * out_bytes + temp_bytes + (2 << 20)
    vmem_cap = 64 << 20
    try:
        vmem_cap = int(getattr(pltpu.get_tpu_info(), "vmem_capacity_bytes", vmem_cap))
    except Exception:
        pass
    vmem_limit = int(min(max(vmem_needed, 32 << 20), vmem_cap - (8 << 20)))

    # Advisory cost for the surrounding XLA schedule (memory bound kernel).
    hbm_bytes = (B * C * Hp * Wp * itemsize
                 + nb * n_h * 2 * halo_bytes
                 + B * Hp * Wp * 4)
    flops = B * Hp * Wp * (2 * max(C - 1, 0) + 10)
    cost = pl.CostEstimate(flops=int(flops), transcendentals=0,
                           bytes_accessed=int(hbm_bytes))

    th8 = TH // 8
    last_blk8 = Hp // 8 - 1

    out = pl.pallas_call(
        _make_edge_mask_kernel(float(thres), use_col_mask),
        out_shape=jax.ShapeDtypeStruct((B, 1, Hp, Wp), jnp.float32),
        grid=(nb, n_h),
        in_specs=[
            # Main (TB, C, TH, Wp) slab.
            pl.BlockSpec((TB, C, TH, Wp), lambda b, h: (b, 0, h, 0)),
            # 8-row block just above the tile (its last row is the top halo).
            pl.BlockSpec((TB, C, 8, Wp),
                         lambda b, h: (b, 0, jnp.maximum(h * th8 - 1, 0), 0)),
            # 8-row block just below the tile (its first row is the bottom halo).
            pl.BlockSpec((TB, C, 8, Wp),
                         lambda b, h: (b, 0, jnp.minimum((h + 1) * th8, last_blk8), 0)),
        ],
        out_specs=pl.BlockSpec((TB, 1, TH, Wp), lambda b, h: (b, 0, h, 0)),
        compiler_params=pltpu.CompilerParams(
            dimension_semantics=("parallel", "parallel"),
            vmem_limit_bytes=vmem_limit,
        ),
        cost_estimate=cost,
    )(x, x, x)

    if Hp != H or Wp != W:
        out = out[:, :, :H, :W]
    return out


def _reference(batch_depth: jax.Array, thres: float) -> jax.Array:
    """Pure-JAX reference mirroring the PyTorch module (unfold + min/max)."""
    B, C, H, W = batch_depth.shape
    x = batch_depth.astype(jnp.float32)
    p = jnp.pad(x, ((0, 0), (0, 0), (1, 1), (1, 1)))  # zero padding, like F.unfold
    patches = jnp.stack(
        [p[:, :, i:i + H, j:j + W] for i in range(3) for j in range(3)], axis=1
    )  # (B, 9, C, H, W)
    min_v = patches.min(axis=(1, 2))
    max_v = patches.max(axis=(1, 2))
    mask = (max_v - min_v) > jnp.float32(thres)
    return mask[:, None, :, :].astype(jnp.float32)


if __name__ == "__main__":
    key = jax.random.PRNGKey(0)
    k1, k2, k3, k4 = jax.random.split(key, 4)
    thres = 0.1

    # 1) Small, unaligned W: lane padding path, single H tile, batch blocking.
    d1 = jax.random.uniform(k1, (2, 1, 16, 16), dtype=jnp.float32)
    o1 = jax.block_until_ready(extract_depth_edge_mask(d1, thres))
    assert o1.shape == (2, 1, 16, 16) and o1.dtype == jnp.float32
    assert jnp.array_equal(o1, _reference(d1, thres)), "mismatch on 16x16"

    # 2) Lane-aligned plane: zero-copy path with explicit column edge masks.
    d2 = jax.random.uniform(k2, (2, 1, 64, 128), dtype=jnp.float32)
    o2 = jax.block_until_ready(extract_depth_edge_mask(d2, thres))
    assert jnp.array_equal(o2, _reference(d2, thres)), "mismatch on 64x128"

    # 3) Multi-channel, H not a multiple of the tile: multi-tile halo path.
    d3 = jax.random.uniform(k3, (2, 3, 40, 256), dtype=jnp.float32)
    o3 = jax.block_until_ready(extract_depth_edge_mask(d3, thres, tile_rows=16))
    assert jnp.array_equal(o3, _reference(d3, thres)), "mismatch on tiled 40x256"

    # 4) bf16 input: reductions stay in bf16, final compare in f32 (v6e/v7x).
    d4 = jax.random.uniform(k4, (2, 2, 32, 144), dtype=jnp.float32).astype(jnp.bfloat16)
    o4 = jax.block_until_ready(extract_depth_edge_mask(d4, thres, tile_rows=8))
    assert jnp.array_equal(o4, _reference(d4, thres)), "mismatch on bf16 case"

    print("KERNEL_OK")
</pallas_src>

<mosaic_0001>
module attributes {stable_mosaic.version = 11 : i64} {
  func.func @kernel(%arg0: i32, %arg1: i32, %arg2: memref<2x1x16x128xf32, #tpu.memory_space<vmem>>, %arg3: memref<2x1x8x128xf32, #tpu.memory_space<vmem>>, %arg4: memref<2x1x8x128xf32, #tpu.memory_space<vmem>>, %arg5: memref<2x1x16x128xf32, #tpu.memory_space<vmem>>) attributes {dimension_semantics = [#tpu.dimension_semantics<parallel>, #tpu.dimension_semantics<parallel>], iteration_bounds = array<i64: 1, 1>, scalar_prefetch = 0 : i64, scratch_operands = 0 : i64, tpu.core_type = #tpu.core_type<tc>, window_params = [{transform_indices = @transform_0, window_bounds = array<i64: 2, 1, 16, 128>}, {transform_indices = @transform_1, window_bounds = array<i64: 2, 1, 8, 128>}, {transform_indices = @transform_2, window_bounds = array<i64: 2, 1, 8, 128>}, {transform_indices = @transform_3, window_bounds = array<i64: 2, 1, 16, 128>}]} {
    %c0_i32 = arith.constant 0 : i32
    %0 = arith.cmpi eq, %arg1, %c0_i32 : i32
    %c0_i32_0 = arith.constant 0 : i32
    %1 = arith.cmpi eq, %arg1, %c0_i32_0 : i32
    %c0 = arith.constant 0 : index
    %c0_1 = arith.constant 0 : index
    %c0_2 = arith.constant 0 : index
    %c0_3 = arith.constant 0 : index
    %2 = vector.load %arg2[%c0, %c0_1, %c0_2, %c0_3] : memref<2x1x16x128xf32, #tpu.memory_space<vmem>>, vector<2x1x16x128xf32>
    %cst = arith.constant dense<0x7F800000> : vector<2x16x128xf32>
    %3 = vector.multi_reduction <minimumf>, %2, %cst [1] : vector<2x1x16x128xf32> to vector<2x16x128xf32>
    %cst_4 = arith.constant dense<0xFF800000> : vector<2x16x128xf32>
    %4 = vector.multi_reduction <maximumf>, %2, %cst_4 [1] : vector<2x1x16x128xf32> to vector<2x16x128xf32>
    %c0_5 = arith.constant 0 : index
    %c0_6 = arith.constant 0 : index
    %c7 = arith.constant 7 : index
    %c0_7 = arith.constant 0 : index
    %5 = vector.load %arg3[%c0_5, %c0_6, %c7, %c0_7] : memref<2x1x8x128xf32, #tpu.memory_space<vmem>>, vector<2x1x1x128xf32>
    %c0_8 = arith.constant 0 : index
    %c0_9 = arith.constant 0 : index
    %c0_10 = arith.constant 0 : index
    %c0_11 = arith.constant 0 : index
    %6 = vector.load %arg4[%c0_8, %c0_9, %c0_10, %c0_11] : memref<2x1x8x128xf32, #tpu.memory_space<vmem>>, vector<2x1x1x128xf32>
    %cst_12 = arith.constant dense<0x7F800000> : vector<2x1x128xf32>
    %7 = vector.multi_reduction <minimumf>, %5, %cst_12 [1] : vector<2x1x1x128xf32> to vector<2x1x128xf32>
    %cst_13 = arith.constant dense<0xFF800000> : vector<2x1x128xf32>
    %8 = vector.multi_reduction <maximumf>, %5, %cst_13 [1] : vector<2x1x1x128xf32> to vector<2x1x128xf32>
    %cst_14 = arith.constant dense<0x7F800000> : vector<2x1x128xf32>
    %9 = vector.multi_reduction <minimumf>, %6, %cst_14 [1] : vector<2x1x1x128xf32> to vector<2x1x128xf32>
    %cst_15 = arith.constant dense<0xFF800000> : vector<2x1x128xf32>
    %10 = vector.multi_reduction <maximumf>, %6, %cst_15 [1] : vector<2x1x1x128xf32> to vector<2x1x128xf32>
    %cst_16 = arith.constant 0.000000e+00 : f32
    %11 = vector.broadcast %cst_16 : f32 to vector<2x1x128xf32>
    %12 = arith.select %0, %11, %7 : vector<2x1x128xf32>
    %cst_17 = arith.constant 0.000000e+00 : f32
    %13 = vector.broadcast %cst_17 : f32 to vector<2x1x128xf32>
    %14 = arith.select %0, %13, %8 : vector<2x1x128xf32>
    %cst_18 = arith.constant 0.000000e+00 : f32
    %15 = vector.broadcast %cst_18 : f32 to vector<2x1x128xf32>
    %16 = arith.select %1, %15, %9 : vector<2x1x128xf32>
    %cst_19 = arith.constant 0.000000e+00 : f32
    %17 = vector.broadcast %cst_19 : f32 to vector<2x1x128xf32>
    %18 = arith.select %1, %17, %10 : vector<2x1x128xf32>
    %19 = tpu.iota {dimensions = array<i32: 1>} : vector<2x16x128xi32>
    %c0_i32_20 = arith.constant 0 : i32
    %20 = vector.broadcast %c0_i32_20 : i32 to vector<2x16x128xi32>
    %21 = arith.cmpi eq, %19, %20 : vector<2x16x128xi32>
    %c15_i32 = arith.constant 15 : i32
    %22 = vector.broadcast %c15_i32 : i32 to vector<2x16x128xi32>
    %23 = arith.cmpi eq, %19, %22 : vector<2x16x128xi32>
    %c1_i32 = arith.constant 1 : i32
    %24 = tpu.dynamic_rotate %3 by %c1_i32 dim 1 : vector<2x16x128xf32>, i32 -> vector<2x16x128xf32>
    %25 = vector.shape_cast %12 : vector<2x1x128xf32> to vector<2x1x128xf32>
    %26 = vector.broadcast %25 : vector<2x1x128xf32> to vector<2x16x128xf32>
    %27 = arith.select %21, %26, %24 : vector<2x16x128xi1>, vector<2x16x128xf32>
    %c1_i32_21 = arith.constant 1 : i32
    %28 = tpu.dynamic_rotate %4 by %c1_i32_21 dim 1 : vector<2x16x128xf32>, i32 -> vector<2x16x128xf32>
    %29 = vector.shape_cast %14 : vector<2x1x128xf32> to vector<2x1x128xf32>
    %30 = vector.broadcast %29 : vector<2x1x128xf32> to vector<2x16x128xf32>
    %31 = arith.select %21, %30, %28 : vector<2x16x128xi1>, vector<2x16x128xf32>
    %c15_i32_22 = arith.constant 15 : i32
    %32 = tpu.dynamic_rotate %3 by %c15_i32_22 dim 1 : vector<2x16x128xf32>, i32 -> vector<2x16x128xf32>
    %33 = vector.shape_cast %16 : vector<2x1x128xf32> to vector<2x1x128xf32>
    %34 = vector.broadcast %33 : vector<2x1x128xf32> to vector<2x16x128xf32>
    %35 = arith.select %23, %34, %32 : vector<2x16x128xi1>, vector<2x16x128xf32>
    %c15_i32_23 = arith.constant 15 : i32
    %36 = tpu.dynamic_rotate %4 by %c15_i32_23 dim 1 : vector<2x16x128xf32>, i32 -> vector<2x16x128xf32>
    %37 = vector.shape_cast %18 : vector<2x1x128xf32> to vector<2x1x128xf32>
    %38 = vector.broadcast %37 : vector<2x1x128xf32> to vector<2x16x128xf32>
    %39 = arith.select %23, %38, %36 : vector<2x16x128xi1>, vector<2x16x128xf32>
    %40 = arith.minimumf %3, %27 : vector<2x16x128xf32>
    %41 = arith.minimumf %40, %35 : vector<2x16x128xf32>
    %42 = arith.maximumf %4, %31 : vector<2x16x128xf32>
    %43 = arith.maximumf %42, %39 : vector<2x16x128xf32>
    %c1_i32_24 = arith.constant 1 : i32
    %44 = tpu.dynamic_rotate %41 by %c1_i32_24 dim 2 : vector<2x16x128xf32>, i32 -> vector<2x16x128xf32>
    %c1_i32_25 = arith.constant 1 : i32
    %45 = tpu.dynamic_rotate %43 by %c1_i32_25 dim 2 : vector<2x16x128xf32>, i32 -> vector<2x16x128xf32>
    %c127_i32 = arith.constant 127 : i32
    %46 = tpu.dynamic_rotate %41 by %c127_i32 dim 2 : vector<2x16x128xf32>, i32 -> vector<2x16x128xf32>
    %c127_i32_26 = arith.constant 127 : i32
    %47 = tpu.dynamic_rotate %43 by %c127_i32_26 dim 2 : vector<2x16x128xf32>, i32 -> vector<2x16x128xf32>
    %48 = arith.minimumf %41, %44 : vector<2x16x128xf32>
    %49 = arith.minimumf %48, %46 : vector<2x16x128xf32>
    %50 = arith.maximumf %43, %45 : vector<2x16x128xf32>
    %51 = arith.maximumf %50, %47 : vector<2x16x128xf32>
    %52 = arith.subf %51, %49 : vector<2x16x128xf32>
    %cst_27 = arith.constant 1.000000e-01 : f32
    %53 = vector.broadcast %cst_27 : f32 to vector<2x16x128xf32>
    %54 = arith.cmpf ogt, %52, %53 : vector<2x16x128xf32>
    %55 = arith.extui %54 : vector<2x16x128xi1> to vector<2x16x128xi32>
    %56 = arith.sitofp %55 : vector<2x16x128xi32> to vector<2x16x128xf32>
    %c0_28 = arith.constant 0 : index
    %c0_29 = arith.constant 0 : index
    %c0_30 = arith.constant 0 : index
    %c0_31 = arith.constant 0 : index
    %57 = vector.load %arg5[%c0_28, %c0_29, %c0_30, %c0_31] : memref<2x1x16x128xf32, #tpu.memory_space<vmem>>, vector<2x1x16x128xf32>
    %58 = vector.shape_cast %57 : vector<2x1x16x128xf32> to vector<2x16x128xf32>
    %59 = vector.shape_cast %56 : vector<2x16x128xf32> to vector<2x1x16x128xf32>
    tpu.vector_store %arg5[%c0_28, %c0_29, %c0_30, %c0_31], %59 {strides = array<i32>} : memref<2x1x16x128xf32, #tpu.memory_space<vmem>>, vector<2x1x16x128xf32>,
    return
  }
  func.func @transform_0(%arg0: i32, %arg1: i32) -> (i32, i32, i32, i32) {
    %c0_i32 = arith.constant 0 : i32
    %c0_i32_0 = arith.constant 0 : i32
    %c0_i32_1 = arith.constant 0 : i32
    return %arg0, %c0_i32, %arg1, %c0_i32_0 : i32, i32, i32, i32
  }
  func.func @transform_1(%arg0: i32, %arg1: i32) -> (i32, i32, i32, i32) {
    %c2_i32 = arith.constant 2 : i32
    %0 = arith.muli %arg1, %c2_i32 : i32
    %c1_i32 = arith.constant 1 : i32
    %1 = arith.subi %0, %c1_i32 : i32
    %c0_i32 = arith.constant 0 : i32
    %2 = arith.maxsi %1, %c0_i32 : i32
    %c0_i32_0 = arith.constant 0 : i32
    %c0_i32_1 = arith.constant 0 : i32
    %c0_i32_2 = arith.constant 0 : i32
    return %arg0, %c0_i32_0, %2, %c0_i32_1 : i32, i32, i32, i32
  }
  func.func @transform_2(%arg0: i32, %arg1: i32) -> (i32, i32, i32, i32) {
    %c1_i32 = arith.constant 1 : i32
    %0 = arith.addi %arg1, %c1_i32 : i32
    %c2_i32 = arith.constant 2 : i32
    %1 = arith.muli %0, %c2_i32 : i32
    %c1_i32_0 = arith.constant 1 : i32
    %2 = arith.minsi %1, %c1_i32_0 : i32
    %c0_i32 = arith.constant 0 : i32
    %c0_i32_1 = arith.constant 0 : i32
    %c0_i32_2 = arith.constant 0 : i32
    return %arg0, %c0_i32, %2, %c0_i32_1 : i32, i32, i32, i32
  }
  func.func @transform_3(%arg0: i32, %arg1: i32) -> (i32, i32, i32, i32) {
    %c0_i32 = arith.constant 0 : i32
    %c0_i32_0 = arith.constant 0 : i32
    %c0_i32_1 = arith.constant 0 : i32
    return %arg0, %c0_i32, %arg1, %c0_i32_0 : i32, i32, i32, i32
  }
}

</mosaic_0001>

<llo_original>
// kernel: tpu_custom_call.1
$region0: #{tpu_custom_call.1}
  #allocation0 [shape = 'u32[]', space=smem, size = 0x4, offset = 0x4, fixed_abs, tag = 'smem constant byte address 0x4 - core index']
  #allocation1 [shape = 'u32[144,128]{1,0:T(1,128)}', space=vmem, size = 0x12000, scoped, tag = 'internal scratch']
  %s0 = inlined_call_operand.hbm [shape: f32[2,1,16,128], index: 0, kind: input, shape index: {}]
  %s1 = inlined_call_operand.hbm [shape: f32[2,1,16,128], index: 1, kind: input, shape index: {}]
  %s2 = inlined_call_operand.hbm [shape: f32[2,1,16,128], index: 2, kind: input, shape index: {}]
  %s3 = inlined_call_operand.hbm [shape: f32[2,1,16,128], index: 3, kind: output, shape index: {}]
  %s4 = sld [smem:[#allocation0]]
  $region34: #{tpu_custom_call.1} parent=0
    _
  %s6 = ssub.s32 1, %s4
  %s7 = scalar_select 0, %s6, %s4
  $region1: #{tpu_custom_call.1} parent=0
    #allocation2 [shape = 'u8[16384]{0}', space=vmem, size = 0x4000, scoped, tag = 'input window, operand 0, single buffered']
    #allocation3 [shape = 's32[1]{0}', space=sflag, size = 0x4, scoped, tag = 'scoped memory for tpu_custom_call.1']
    #allocation4 [shape = 's32[1]{0}', space=sflag, size = 0x4, scoped, tag = 'scoped memory for tpu_custom_call.1']
    #allocation5 [shape = 'u8[8192]{0}', space=vmem, size = 0x2000, scoped, tag = 'input window, operand 1, single buffered']
    #allocation6 [shape = 's32[1]{0}', space=sflag, size = 0x4, scoped, tag = 'scoped memory for tpu_custom_call.1']
    #allocation7 [shape = 'u8[8192]{0}', space=vmem, size = 0x2000, scoped, tag = 'input window, operand 2, single buffered']
    #allocation8 [shape = 'u8[16384]{0}', space=vmem, size = 0x4000, scoped, tag = 'output window, operand 0, single buffered']
    %8 = vsyncpa [#allocation3], 0
    %9 = vsyncpa [#allocation6], 0
    %10 = vsyncpa [#allocation4], 0
    // Predicated region
    $region2: #{tpu_custom_call.1} parent=1 // pred_check
      _
    $region3: #{tpu_custom_call.1} parent=1 // pred_check_branch
      %12 = sbr.rel (0) target = $region5
    $region4: #{tpu_custom_call.1} parent=1 // pred_region
      %s14 = ssub.s32 512, 512
      %15 = vsyncadd [#allocation3], %s14
      %s16 = sshll.u32 [#allocation2], 4
      %s17 = int_to_ptr.vmem [resolvable:$true] %s16
      %22 = dma.hbm_to_vmem [thread:$0]  %s0, 512, %s17, [#allocation3], 128, 128, 8
    $region5: #{tpu_custom_call.1} parent=1 // pred_fallthru
      _
    // Predicated region
    $region6: #{tpu_custom_call.1} parent=1 // pred_check
      _
    $region7: #{tpu_custom_call.1} parent=1 // pred_check_branch
      %24 = sbr.rel (0) target = $region9
    $region8: #{tpu_custom_call.1} parent=1 // pred_region
      %s25 = smul.u32 0, 2
      %s26 = ssub.s32 %s25, 1
      %p27 = scmp.gt.s32.totalorder %s26, 0
      %s28 = scalar_select %p27, %s26, 0
      %s30 = ssub.s32 256, 256
      %31 = vsyncadd [#allocation6], %s30
      %s32 = smul.addr %s28, 128
      %s33 = scalar_lea.hbm %s1, %s32
      %s34 = sshll.u32 [#allocation5], 4
      %s35 = int_to_ptr.vmem [resolvable:$true] %s34
      %40 = dma.hbm_to_vmem [thread:$0]  %s33, 256, %s35, [#allocation6], 256, 128, 8
    $region9: #{tpu_custom_call.1} parent=1 // pred_fallthru
      _
    // Predicated region
    $region10: #{tpu_custom_call.1} parent=1 // pred_check
      _
    $region11: #{tpu_custom_call.1} parent=1 // pred_check_branch
      %42 = sbr.rel (0) target = $region13
    $region12: #{tpu_custom_call.1} parent=1 // pred_region
      %s43 = sadd.s32 0, 1
      %s44 = smul.u32 %s43, 2
      %p45 = scmp.lt.s32.totalorder %s44, 1
      %s46 = scalar_select %p45, %s44, 1
      %s48 = ssub.s32 256, 256
      %49 = vsyncadd [#allocation6], %s48
      %s50 = smul.addr %s46, 128
      %s51 = scalar_lea.hbm %s2, %s50
      %s52 = sshll.u32 [#allocation7], 4
      %s53 = int_to_ptr.vmem [resolvable:$true] %s52
      %58 = dma.hbm_to_vmem [thread:$0]  %s51, 256, %s53, [#allocation6], 256, 128, 8
    $region13: #{tpu_custom_call.1} parent=1 // pred_fallthru
      _
    // Predicated region
    $region14: #{tpu_custom_call.1} parent=1 // pred_check
      _
    $region15: #{tpu_custom_call.1} parent=1 // pred_check_branch
      %60 = sbr.rel (0) target = $region17
    $region16: #{tpu_custom_call.1} parent=1 // pred_region
      %61 = dma.done [#allocation3], 512
    $region17: #{tpu_custom_call.1} parent=1 // pred_fallthru
      _
    // Predicated region
    $region18: #{tpu_custom_call.1} parent=1 // pred_check
      _
    $region19: #{tpu_custom_call.1} parent=1 // pred_check_branch
      %63 = sbr.rel (0) target = $region21
    $region20: #{tpu_custom_call.1} parent=1 // pred_region
      %64 = dma.done [#allocation6], 256
    $region21: #{tpu_custom_call.1} parent=1 // pred_fallthru
      _
    // Predicated region
    $region22: #{tpu_custom_call.1} parent=1 // pred_check
      _
    $region23: #{tpu_custom_call.1} parent=1 // pred_check_branch
      %66 = sbr.rel (0) target = $region25
    $region24: #{tpu_custom_call.1} parent=1 // pred_region
      %67 = dma.done [#allocation6], 256
    $region25: #{tpu_custom_call.1} parent=1 // pred_fallthru
      _
    %s68 = smul.u32 0, 2
    %s69 = ssub.s32 %s68, 1
    %p70 = scmp.gt.s32.totalorder %s69, 0
    %s71 = scalar_select %p70, %s69, 0
    %s72 = sadd.s32 0, 1
    %s73 = smul.u32 %s72, 2
    %p74 = scmp.lt.s32.totalorder %s73, 1
    %s75 = scalar_select %p74, %s73, 1
    %p76 = scmp.eq.s32.totalorder 0, 0
    %v77 = vld [vmem:[#allocation2] sm:$0xff]
    %v78 = vld [vmem:[#allocation2 + $0x8] sm:$0xff]
    %v79 = vld [vmem:[#allocation2 + $0x10] sm:$0xff]
    %v80 = vld [vmem:[#allocation2 + $0x18] sm:$0xff]
    %v81 = vld [vmem:[#allocation5 + $0x7] sm:$0x1]
    %v82 = vld [vmem:[#allocation5 + $0xf] sm:$0x1]
    %v83 = vld [vmem:[#allocation7] sm:$0x1]
    %v84 = vld [vmem:[#allocation7 + $0x8] sm:$0x1]
    %s85 = scalar_select %p76, 1, 0
    %v86 = vstv %s85
    %vm87 = vcmp.eq.s32.totalorder %v86, 1
    %v88 = vsel %vm87, 0.0, %v81
    %v89 = vsel %vm87, 0.0, %v82
    %v90 = vsel %vm87, 0.0, %v83
    %v91 = vsel %vm87, 0.0, %v84
    %v92 = vlaneseq
    %v93 = vshrl.u32 %v92, 7
    %v94 = vadd.s32 %v93, 8
    %vm95 = vcmp.eq.s32.totalorder %v93, 0
    %vm96 = vcmp.eq.s32.totalorder %v94, 0
    %vm97 = vcmp.eq.s32.totalorder %v93, 15
    %vm98 = vcmp.eq.s32.totalorder %v94, 15
    %v99 = vrot.slane %v77, 7
    %v100 = vrot.slane %v79, 7
    %v101 = vrot.slane %v78, 7
    %v102 = vrot.slane %v80, 7
    %vm103 = vcmp.lt.s32.totalorder %v93, 1
    %v104 = vsel %vm103, %v99, %v101
    %v105 = vsel %vm103, %v100, %v102
    %v106 = vsel %vm103, %v101, %v99
    %v107 = vsel %vm103, %v102, %v100
    %v108 = vlaneseq
    %v109 = vshrl.u32 %v108, 7
    %v110 = vsub.s32 0, %v109
    %v111 = vrot.slane %v88, %v110
    %v112 = vlaneseq
    %v113 = vshrl.u32 %v112, 7
    %v114 = vsub.s32 0, %v113
    %v115 = vrot.slane %v89, %v114
    %v116 = vsel %vm95, %v111, %v106
    %v117 = vsel %vm96, %v111, %v104
    %v118 = vsel %vm95, %v115, %v107
    %v119 = vsel %vm96, %v115, %v105
    %v120 = vrot.slane %v77, 1
    %v121 = vrot.slane %v79, 1
    %v122 = vrot.slane %v78, 1
    %v123 = vrot.slane %v80, 1
    %vm124 = vcmp.lt.s32.totalorder %v93, 7
    %v125 = vsel %vm124, %v120, %v122
    %v126 = vsel %vm124, %v121, %v123
    %v127 = vsel %vm124, %v122, %v120
    %v128 = vsel %vm124, %v123, %v121
    %v129 = vlaneseq
    %v130 = vshrl.u32 %v129, 7
    %v131 = vsub.s32 0, %v130
    %v132 = vrot.slane %v90, %v131
    %v133 = vlaneseq
    %v134 = vshrl.u32 %v133, 7
    %v135 = vsub.s32 0, %v134
    %v136 = vrot.slane %v91, %v135
    %v137 = vsel %vm97, %v132, %v125
    %v138 = vsel %vm98, %v132, %v127
    %v139 = vsel %vm97, %v136, %v126
    %v140 = vsel %vm98, %v136, %v128
    %v141 = vmin.f32 %v77, %v116
    %v142 = vmin.f32 %v78, %v117
    %v143 = vmin.f32 %v79, %v118
    %v144 = vmin.f32 %v80, %v119
    %v145 = vmin.f32 %v141, %v137
    %v146 = vmin.f32 %v142, %v138
    %v147 = vmin.f32 %v143, %v139
    %v148 = vmin.f32 %v144, %v140
    %v149 = vmax.f32 %v77, %v116
    %v150 = vmax.f32 %v78, %v117
    %v151 = vmax.f32 %v79, %v118
    %v152 = vmax.f32 %v80, %v119
    %v153 = vmax.f32 %v149, %v137
    %v154 = vmax.f32 %v150, %v138
    %v155 = vmax.f32 %v151, %v139
    %v156 = vmax.f32 %v152, %v140
    %157 = vrot.lane.b32.xlu0 %v145, 1
    %v158 = vpop.permute.xlu0 %157
    %159 = vrot.lane.b32.xlu0 %v146, 1
    %v160 = vpop.permute.xlu0 %159
    %161 = vrot.lane.b32.xlu0 %v147, 1
    %v162 = vpop.permute.xlu0 %161
    %163 = vrot.lane.b32.xlu0 %v148, 1
    %v164 = vpop.permute.xlu0 %163
    %165 = vrot.lane.b32.xlu0 %v153, 1
    %v166 = vpop.permute.xlu0 %165
    %167 = vrot.lane.b32.xlu0 %v154, 1
    %v168 = vpop.permute.xlu0 %167
    %169 = vrot.lane.b32.xlu0 %v155, 1
    %v170 = vpop.permute.xlu0 %169
    %171 = vrot.lane.b32.xlu0 %v156, 1
    %v172 = vpop.permute.xlu0 %171
    %173 = vrot.lane.b32.xlu0 %v145, 127
    %v174 = vpop.permute.xlu0 %173
    %175 = vrot.lane.b32.xlu0 %v146, 127
    %v176 = vpop.permute.xlu0 %175
    %177 = vrot.lane.b32.xlu0 %v147, 127
    %v178 = vpop.permute.xlu0 %177
    %179 = vrot.lane.b32.xlu0 %v148, 127
    %v180 = vpop.permute.xlu0 %179
    %181 = vrot.lane.b32.xlu0 %v153, 127
    %v182 = vpop.permute.xlu0 %181
    %183 = vrot.lane.b32.xlu0 %v154, 127
    %v184 = vpop.permute.xlu0 %183
    %185 = vrot.lane.b32.xlu0 %v155, 127
    %v186 = vpop.permute.xlu0 %185
    %187 = vrot.lane.b32.xlu0 %v156, 127
    %v188 = vpop.permute.xlu0 %187
    %v189 = vmin.f32 %v145, %v158
    %v190 = vmin.f32 %v146, %v160
    %v191 = vmin.f32 %v147, %v162
    %v192 = vmin.f32 %v148, %v164
    %v193 = vmin.f32 %v189, %v174
    %v194 = vmin.f32 %v190, %v176
    %v195 = vmin.f32 %v191, %v178
    %v196 = vmin.f32 %v192, %v180
    %v197 = vmax.f32 %v153, %v166
    %v198 = vmax.f32 %v154, %v168
    %v199 = vmax.f32 %v155, %v170
    %v200 = vmax.f32 %v156, %v172
    %v201 = vmax.f32 %v197, %v182
    %v202 = vmax.f32 %v198, %v184
    %v203 = vmax.f32 %v199, %v186
    %v204 = vmax.f32 %v200, %v188
    %v205 = vsub.f32 %v201, %v193
    %v206 = vsub.f32 %v202, %v194
    %v207 = vsub.f32 %v203, %v195
    %v208 = vsub.f32 %v204, %v196
    %vm209 = vcmp.gt.f32.partialorder %v205, 0.1
    %vm210 = vcmp.gt.f32.partialorder %v206, 0.1
    %vm211 = vcmp.gt.f32.partialorder %v207, 0.1
    %vm212 = vcmp.gt.f32.partialorder %v208, 0.1
    %v213 = vsel %vm209, 1, 0
    %v214 = vsel %vm210, 1, 0
    %v215 = vsel %vm211, 1, 0
    %v216 = vsel %vm212, 1, 0
    %v217 = vcvt.s32.f32 %v213
    %v218 = vcvt.s32.f32 %v214
    %v219 = vcvt.s32.f32 %v215
    %v220 = vcvt.s32.f32 %v216
    %221 = vst [vmem:[#allocation8] sm:$0xff] %v217
    %222 = vst [vmem:[#allocation8 + $0x8] sm:$0xff] %v218
    %223 = vst [vmem:[#allocation8 + $0x10] sm:$0xff] %v219
    %224 = vst [vmem:[#allocation8 + $0x18] sm:$0xff] %v220
    // Predicated region
    $region26: #{tpu_custom_call.1} parent=1 // pred_check
      _
    $region27: #{tpu_custom_call.1} parent=1 // pred_check_branch
      %226 = sbr.rel (0) target = $region29
    $region28: #{tpu_custom_call.1} parent=1 // pred_region
      %s228 = ssub.s32 512, 512
      %229 = vsyncadd [#allocation4], %s228
      %s230 = sshll.u32 [#allocation8], 4
      %s231 = int_to_ptr.vmem [resolvable:$true] %s230
      %236 = dma.vmem_to_hbm [thread:$0]  %s231, 512, %s3, [#allocation4], 128, 128, 8
    $region29: #{tpu_custom_call.1} parent=1 // pred_fallthru
      _
    // Predicated region
    $region30: #{tpu_custom_call.1} parent=1 // pred_check
      _
    $region31: #{tpu_custom_call.1} parent=1 // pred_check_branch
      %238 = sbr.rel (0) target = $region33
    $region32: #{tpu_custom_call.1} parent=1 // pred_region
      %239 = dma.done [#allocation4], 512
    $region33: #{tpu_custom_call.1} parent=1 // pred_fallthru
      _
    %240 = vsyncpa [#allocation3], 1
    %241 = vsyncpa [#allocation6], 1
    %242 = vsyncpa [#allocation4], 1

</llo_original>
